<compile_context>
chip_gen: v7x
topology: tpu7x:2x2x1
jax: 0.10.0
libtpu: 0.0.40
codegen_flags: <defaults>
</compile_context>

<pallas_src>
import functools

import jax
import jax.numpy as jnp
from jax import lax
from jax.experimental import pallas as pl
from jax.experimental.pallas import tpu as pltpu

EPS = 1e-5
NEG_SLOPE = 0.01      # nn.LeakyReLU default negative_slope
MXU_MIN_CIN = 8       # below this, the 1x1 conv stays on the VPU (scaled adds)


def _leaky(x):
    # LeakyReLU with 0 < slope < 1:  max(x, slope*x) == where(x > 0, x, slope*x)
    # but costs 2 VALU ops instead of compare+select's 3.
    return jnp.maximum(x, NEG_SLOPE * x)


def cnnconv_kernel(x_ref, wpf_ref, pbias_ref, dw_ref, db_ref, o_ref, ypad_ref,
                   *, H, W, pad_off):
    """One grid step = NB batch elements, lane-dense (C, H*W) layout.

    x_ref:     (NB, Cin, HW)   input block (NCHW with spatial flattened)
    wpf_ref:   (Cout, Cin)     pointwise weight with BN scale folded in
    pbias_ref: (Cout, 1)       pointwise-equivalent bias (wp @ BN_shift)
    dw_ref:    (Cout, 9)       depthwise 3x3 weights (taps flattened row-major)
    db_ref:    (Cout, 1)       depthwise conv bias
    o_ref:     (NB, Cout, HW)  output block
    ypad_ref:  (Cout, pad_off + HW + W + 1) VMEM staging buffer.  Interior
               [pad_off, pad_off+HW) holds y; the (W+1)-lane strips on either
               side are zeroed once per step and act as the depthwise conv's
               zero padding for the dy = +/-1 taps (so no row masks needed).
    """
    NB = x_ref.shape[0]
    Cin = x_ref.shape[1]
    HW = x_ref.shape[2]
    Cout = o_ref.shape[1]

    # Zero ONLY the (W+1)-lane slack strips, unconditionally each grid step
    # (tiny, and stays correct if the grid axis is megacore-split so each core
    # owns its own scratch).
    ypad_ref[:, pad_off - (W + 1):pad_off] = jnp.zeros((Cout, W + 1), jnp.float32)
    ypad_ref[:, pad_off + HW:pad_off + HW + W + 1] = jnp.zeros(
        (Cout, W + 1), jnp.float32)

    # Border-validity masks, hoisted once (shared by all taps of all images).
    # Only left/right column masks are needed; top/bottom rows resolve to the
    # zeroed slack strips above.
    pos = lax.broadcasted_iota(jnp.int32, (1, HW), 1)
    ww = pos % W
    valid_l = ww >= 1            # (w - 1) is inside the image
    valid_r = ww <= W - 2        # (w + 1) is inside the image
    col_mask = {-1: valid_l, 0: None, 1: valid_r}

    wpf = wpf_ref[...]           # (Cout, Cin)
    pbias = pbias_ref[...]       # (Cout, 1)
    dw = dw_ref[...]             # (Cout, 9)
    db = db_ref[...]             # (Cout, 1)

    for nb in range(NB):         # static unroll over batch elements in block
        x = x_ref[nb]            # (Cin, HW), lane-dense

        # ---- BN (folded) + 1x1 pointwise conv + LeakyReLU ----
        if Cin >= MXU_MIN_CIN:
            # MXU path: frees ~2*Cin VALU ops per output element; the MXU is
            # otherwise completely idle in this kernel.
            y = jnp.dot(wpf, x, preferred_element_type=jnp.float32)
        else:
            # Tiny Cin: scaled adds on the VPU, initialized from channel 0
            # (no zeros-materialize + add pass).
            y = wpf[:, 0:1] * x[0:1, :]
            for ci in range(1, Cin):
                y = y + wpf[:, ci:ci + 1] * x[ci:ci + 1, :]
        y = _leaky(y + pbias)                        # (Cout, HW)

        # ---- 3x3 depthwise conv (padding=1, groups=Cout) + bias + LeakyReLU
        # Stage y once with an aligned interior store; the 9 taps are static
        # lane-window loads; only dx = +/-1 taps need a (precomputed) mask.
        # TODO(synk): for production W % 128 == 0, use 3 lane-aligned row
        #             loads + pltpu.roll(+/-1) for the dx shifts instead.
        ypad_ref[:, pad_off:pad_off + HW] = y

        acc = y * dw[:, 4:5]                         # center tap (dy=0, dx=0)
        for dy in (-1, 0, 1):
            for dx in (-1, 0, 1):
                if dy == 0 and dx == 0:
                    continue
                k = (dy + 1) * 3 + (dx + 1)
                off = pad_off + dy * W + dx
                tap = ypad_ref[:, off:off + HW]      # static lane-window load
                m = col_mask[dx]
                if m is not None:
                    tap = jnp.where(m, tap, 0.0)
                acc = acc + tap * dw[:, k:k + 1]     # per-channel weight

        o_ref[nb] = _leaky(acc + db).astype(o_ref.dtype)


@functools.partial(jax.jit, static_argnames=("batch_block",))
def cnnconv_forward(x_nchw, bn_gamma, bn_beta, wp, dw, db, *, batch_block=None):
    """Full CNNCONV forward (training-mode BatchNorm).  x_nchw: (N, Cin, H, W)."""
    N, Cin, H, W = x_nchw.shape
    Cout = wp.shape[0]
    HW = H * W

    # Free (contiguous) reshape: NCHW -> (N, C, H*W).  No transposes.
    x_flat = x_nchw.reshape(N, Cin, HW)

    # BatchNorm2d training-mode batch stats (biased variance), two-pass form
    # for numerical robustness (E[x^2]-E[x]^2 cancels badly when |mean|>>std).
    # TODO(synk): in eval mode fold running_mean/running_var here and skip this
    #             extra pass over x entirely (largest avoidable HBM cost).
    mean = jnp.mean(x_flat, axis=(0, 2))
    var = jnp.mean(jnp.square(x_flat - mean[None, :, None]), axis=(0, 2))
    scale = bn_gamma * lax.rsqrt(var + EPS)                 # (Cin,)
    shift = bn_beta - mean * scale                          # (Cin,)

    # Fold BN affine into the pointwise conv:  wp @ (x*scale + shift)
    #   = (wp * scale) @ x + (wp @ shift)
    wp2 = wp.reshape(Cout, Cin)
    wpf = wp2 * scale[None, :]                              # (Cout, Cin)
    pbias = (wp2 @ shift).reshape(Cout, 1)                  # (Cout, 1)
    dw_k = dw.reshape(Cout, 9)                              # (Cout, 9)
    db_k = db.reshape(Cout, 1)                              # (Cout, 1)

    # Batch granularity: v5e/v6e have a single TensorCore, so default to the
    # whole batch in ONE grid step (amortizes per-step overhead / DMA setup).
    # On v7x (2 TCs), pass batch_block=ceil(N/2) so the "parallel" grid axis
    # megacore-shards once per-step traffic is large enough (>= ~512 KB).
    nb = N if batch_block is None else batch_block
    assert N % nb == 0, "batch_block must divide N"
    grid = (N // nb,)

    # Depthwise staging buffer: interior stored at a 128-aligned lane offset,
    # with (W+1) lanes of zeroed slack on each side acting as the 3x3 conv's
    # zero padding for the dy = +/-1 taps.
    pad_off = max(128, ((W + 1 + 127) // 128) * 128)
    padw = pad_off + HW + W + 1

    kernel = functools.partial(cnnconv_kernel, H=H, W=W, pad_off=pad_off)

    out_flat = pl.pallas_call(
        kernel,
        out_shape=jax.ShapeDtypeStruct((N, Cout, HW), jnp.float32),
        grid=grid,
        in_specs=[
            pl.BlockSpec((nb, Cin, HW), lambda n: (n, 0, 0)),
            pl.BlockSpec((Cout, Cin), lambda n: (0, 0)),
            pl.BlockSpec((Cout, 1), lambda n: (0, 0)),
            pl.BlockSpec((Cout, 9), lambda n: (0, 0)),
            pl.BlockSpec((Cout, 1), lambda n: (0, 0)),
        ],
        out_specs=pl.BlockSpec((nb, Cout, HW), lambda n: (n, 0, 0)),
        scratch_shapes=[pltpu.VMEM((Cout, padw), jnp.float32)],
        compiler_params=pltpu.CompilerParams(
            dimension_semantics=("parallel",),
            # 32 MiB sits comfortably under v7x's 64 MiB/TC and v5e/v6e's
            # 128 MiB.  When enlarging spatial tiles, keep <= ~48 MiB on v7x;
            # v5e/v6e can go toward ~100 MiB with ~2x larger tiles.
            vmem_limit_bytes=32 * 1024 * 1024),
    )(x_flat, wpf, pbias, dw_k, db_k)

    # Free reshape back to NCHW.
    # TODO(synk): at production sizes on v6e/v7x, stream x and the output as
    #             bf16 (keep f32 accumulation in-kernel) to halve HBM traffic.
    return out_flat.reshape(N, Cout, H, W)


def cnnconv_reference(x_nchw, bn_gamma, bn_beta, wp, dw, db):
    """Pure-JAX reference mirroring the PyTorch forward (for verification)."""
    Cout = wp.shape[0]
    mean = jnp.mean(x_nchw, axis=(0, 2, 3))
    var = jnp.mean((x_nchw - mean[None, :, None, None]) ** 2, axis=(0, 2, 3))
    xn = (x_nchw - mean[None, :, None, None]) / jnp.sqrt(var + EPS)[None, :, None, None]
    xn = xn * bn_gamma[None, :, None, None] + bn_beta[None, :, None, None]
    # 1x1 pointwise conv, no bias
    y = lax.conv_general_dilated(xn, wp, window_strides=(1, 1), padding="VALID",
                                 dimension_numbers=("NCHW", "OIHW", "NCHW"))
    y = _leaky(y)
    # 3x3 depthwise conv, padding=1, groups=Cout, with bias
    z = lax.conv_general_dilated(y, dw, window_strides=(1, 1),
                                 padding=((1, 1), (1, 1)),
                                 dimension_numbers=("NCHW", "OIHW", "NCHW"),
                                 feature_group_count=Cout)
    z = z + db[None, :, None, None]
    return _leaky(z)


if __name__ == "__main__":
    key = jax.random.PRNGKey(0)
    N, Cin, Cout, H, W = 2, 4, 8, 16, 16

    k_x, k_g, k_b, k_wp, k_dw, k_db = jax.random.split(key, 6)
    x = jax.random.normal(k_x, (N, Cin, H, W), dtype=jnp.float32)
    bn_gamma = 1.0 + 0.1 * jax.random.normal(k_g, (Cin,), dtype=jnp.float32)
    bn_beta = 0.1 * jax.random.normal(k_b, (Cin,), dtype=jnp.float32)
    wp = jax.random.normal(k_wp, (Cout, Cin, 1, 1), dtype=jnp.float32) * 0.3
    dw = jax.random.normal(k_dw, (Cout, 1, 3, 3), dtype=jnp.float32) * 0.3
    db = jax.random.normal(k_db, (Cout,), dtype=jnp.float32) * 0.1

    out = cnnconv_forward(x, bn_gamma, bn_beta, wp, dw, db)
    out = jax.block_until_ready(out)

    ref = cnnconv_reference(x, bn_gamma, bn_beta, wp, dw, db)
    assert out.shape == (N, Cout, H, W)
    max_err = float(jnp.max(jnp.abs(out - ref)))
    assert jnp.allclose(out, ref, atol=1e-4, rtol=1e-4), max_err

    print("KERNEL_OK")
</pallas_src>

<mosaic_0001>
module attributes {stable_mosaic.version = 11 : i64} {
  func.func @cnnconv_kernel(%arg0: i32, %arg1: memref<2x4x256xf32, #tpu.memory_space<vmem>>, %arg2: memref<8x4xf32, #tpu.memory_space<vmem>>, %arg3: memref<8x1xf32, #tpu.memory_space<vmem>>, %arg4: memref<8x9xf32, #tpu.memory_space<vmem>>, %arg5: memref<8x1xf32, #tpu.memory_space<vmem>>, %arg6: memref<2x8x256xf32, #tpu.memory_space<vmem>>, %arg7: memref<8x401xf32, #tpu.memory_space<vmem>>) attributes {dimension_semantics = [#tpu.dimension_semantics<parallel>], iteration_bounds = array<i64: 1>, scalar_prefetch = 0 : i64, scratch_operands = 1 : i64, tpu.core_type = #tpu.core_type<tc>, window_params = [{transform_indices = @transform_0, window_bounds = array<i64: 2, 4, 256>}, {pipeline_mode = #tpu.pipeline_mode<synchronous>, transform_indices = @transform_1, window_bounds = array<i64: 8, 4>}, {pipeline_mode = #tpu.pipeline_mode<synchronous>, transform_indices = @transform_2, window_bounds = array<i64: 8, 1>}, {pipeline_mode = #tpu.pipeline_mode<synchronous>, transform_indices = @transform_3, window_bounds = array<i64: 8, 9>}, {pipeline_mode = #tpu.pipeline_mode<synchronous>, transform_indices = @transform_4, window_bounds = array<i64: 8, 1>}, {transform_indices = @transform_5, window_bounds = array<i64: 2, 8, 256>}]} {
    %cst = arith.constant 0.000000e+00 : f32
    %0 = vector.broadcast %cst : f32 to vector<8x17xf32>
    %c0 = arith.constant 0 : index
    %c111 = arith.constant 111 : index
    %1 = vector.load %arg7[%c0, %c111] : memref<8x401xf32, #tpu.memory_space<vmem>>, vector<8x17xf32>
    tpu.vector_store %arg7[%c0, %c111], %0 {strides = array<i32>} : memref<8x401xf32, #tpu.memory_space<vmem>>, vector<8x17xf32>,
    %cst_0 = arith.constant 0.000000e+00 : f32
    %2 = vector.broadcast %cst_0 : f32 to vector<8x17xf32>
    %c0_1 = arith.constant 0 : index
    %c384 = arith.constant 384 : index
    %3 = vector.load %arg7[%c0_1, %c384] : memref<8x401xf32, #tpu.memory_space<vmem>>, vector<8x17xf32>
    tpu.vector_store %arg7[%c0_1, %c384], %2 {strides = array<i32>} : memref<8x401xf32, #tpu.memory_space<vmem>>, vector<8x17xf32>,
    %4 = tpu.iota {dimensions = array<i32: 1>} : vector<1x256xi32>
    %c16_i32 = arith.constant 16 : i32
    %c0_i32 = arith.constant 0 : i32
    %5 = arith.cmpi eq, %c16_i32, %c0_i32 : i32
    %c1_i32 = arith.constant 1 : i32
    %6 = arith.select %5, %c1_i32, %c16_i32 : i32
    %7 = vector.broadcast %6 : i32 to vector<1x256xi32>
    %8 = arith.remsi %4, %7 : vector<1x256xi32>
    %c0_i32_2 = arith.constant 0 : i32
    %9 = vector.broadcast %c0_i32_2 : i32 to vector<1x256xi32>
    %10 = arith.cmpi ne, %8, %9 : vector<1x256xi32>
    %c0_i32_3 = arith.constant 0 : i32
    %11 = vector.broadcast %c0_i32_3 : i32 to vector<1x256xi32>
    %12 = arith.cmpi slt, %8, %11 : vector<1x256xi32>
    %c0_i32_4 = arith.constant 0 : i32
    %13 = arith.cmpi slt, %6, %c0_i32_4 : i32
    %14 = vector.broadcast %13 : i1 to vector<1x256xi1>
    %15 = vector.broadcast %14 : vector<1x256xi1> to vector<1x256xi1>
    %16 = arith.xori %12, %15 : vector<1x256xi1>
    %17 = arith.andi %16, %10 : vector<1x256xi1>
    %18 = vector.broadcast %6 : i32 to vector<1x256xi32>
    %19 = arith.addi %8, %18 : vector<1x256xi32>
    %20 = arith.select %17, %19, %8 : vector<1x256xi1>, vector<1x256xi32>
    %c1_i32_5 = arith.constant 1 : i32
    %21 = vector.broadcast %c1_i32_5 : i32 to vector<1x256xi32>
    %22 = arith.cmpi sge, %20, %21 : vector<1x256xi32>
    %c14_i32 = arith.constant 14 : i32
    %23 = vector.broadcast %c14_i32 : i32 to vector<1x256xi32>
    %24 = arith.cmpi sle, %20, %23 : vector<1x256xi32>
    %c0_6 = arith.constant 0 : index
    %c0_7 = arith.constant 0 : index
    %25 = vector.load %arg2[%c0_6, %c0_7] : memref<8x4xf32, #tpu.memory_space<vmem>>, vector<8x4xf32>
    %c0_8 = arith.constant 0 : index
    %c0_9 = arith.constant 0 : index
    %26 = vector.load %arg3[%c0_8, %c0_9] : memref<8x1xf32, #tpu.memory_space<vmem>>, vector<8x1xf32>
    %c0_10 = arith.constant 0 : index
    %c0_11 = arith.constant 0 : index
    %27 = vector.load %arg4[%c0_10, %c0_11] : memref<8x9xf32, #tpu.memory_space<vmem>>, vector<8x9xf32>
    %c0_12 = arith.constant 0 : index
    %c0_13 = arith.constant 0 : index
    %28 = vector.load %arg5[%c0_12, %c0_13] : memref<8x1xf32, #tpu.memory_space<vmem>>, vector<8x1xf32>
    %c0_14 = arith.constant 0 : index
    %c0_15 = arith.constant 0 : index
    %c0_16 = arith.constant 0 : index
    %29 = vector.load %arg1[%c0_14, %c0_15, %c0_16] : memref<2x4x256xf32, #tpu.memory_space<vmem>>, vector<1x4x256xf32>
    %30 = vector.shape_cast %29 : vector<1x4x256xf32> to vector<4x256xf32>
    %31 = vector.extract_strided_slice %25 {offsets = [0, 0], sizes = [8, 1], strides = [1, 1]} : vector<8x4xf32> to vector<8x1xf32>
    %32 = vector.extract_strided_slice %30 {offsets = [0, 0], sizes = [1, 256], strides = [1, 1]} : vector<4x256xf32> to vector<1x256xf32>
    %33 = vector.broadcast %31 : vector<8x1xf32> to vector<8x256xf32>
    %34 = vector.broadcast %32 : vector<1x256xf32> to vector<8x256xf32>
    %35 = arith.mulf %33, %34 : vector<8x256xf32>
    %36 = vector.extract_strided_slice %25 {offsets = [0, 1], sizes = [8, 1], strides = [1, 1]} : vector<8x4xf32> to vector<8x1xf32>
    %37 = vector.extract_strided_slice %30 {offsets = [1, 0], sizes = [1, 256], strides = [1, 1]} : vector<4x256xf32> to vector<1x256xf32>
    %38 = vector.broadcast %36 : vector<8x1xf32> to vector<8x256xf32>
    %39 = vector.broadcast %37 : vector<1x256xf32> to vector<8x256xf32>
    %40 = arith.mulf %38, %39 : vector<8x256xf32>
    %41 = arith.addf %35, %40 : vector<8x256xf32>
    %42 = vector.extract_strided_slice %25 {offsets = [0, 2], sizes = [8, 1], strides = [1, 1]} : vector<8x4xf32> to vector<8x1xf32>
    %43 = vector.extract_strided_slice %30 {offsets = [2, 0], sizes = [1, 256], strides = [1, 1]} : vector<4x256xf32> to vector<1x256xf32>
    %44 = vector.broadcast %42 : vector<8x1xf32> to vector<8x256xf32>
    %45 = vector.broadcast %43 : vector<1x256xf32> to vector<8x256xf32>
    %46 = arith.mulf %44, %45 : vector<8x256xf32>
    %47 = arith.addf %41, %46 : vector<8x256xf32>
    %48 = vector.extract_strided_slice %25 {offsets = [0, 3], sizes = [8, 1], strides = [1, 1]} : vector<8x4xf32> to vector<8x1xf32>
    %49 = vector.extract_strided_slice %30 {offsets = [3, 0], sizes = [1, 256], strides = [1, 1]} : vector<4x256xf32> to vector<1x256xf32>
    %50 = vector.broadcast %48 : vector<8x1xf32> to vector<8x256xf32>
    %51 = vector.broadcast %49 : vector<1x256xf32> to vector<8x256xf32>
    %52 = arith.mulf %50, %51 : vector<8x256xf32>
    %53 = arith.addf %47, %52 : vector<8x256xf32>
    %54 = vector.broadcast %26 : vector<8x1xf32> to vector<8x256xf32>
    %55 = arith.addf %53, %54 : vector<8x256xf32>
    %cst_17 = arith.constant 0.00999999977 : f32
    %56 = vector.broadcast %cst_17 : f32 to vector<8x256xf32>
    %57 = arith.mulf %56, %55 : vector<8x256xf32>
    %58 = arith.maximumf %55, %57 : vector<8x256xf32>
    %c0_18 = arith.constant 0 : index
    %c128 = arith.constant 128 : index
    %59 = vector.load %arg7[%c0_18, %c128] : memref<8x401xf32, #tpu.memory_space<vmem>>, vector<8x256xf32>
    tpu.vector_store %arg7[%c0_18, %c128], %58 {strides = array<i32>} : memref<8x401xf32, #tpu.memory_space<vmem>>, vector<8x256xf32>,
    %60 = vector.extract_strided_slice %27 {offsets = [0, 4], sizes = [8, 1], strides = [1, 1]} : vector<8x9xf32> to vector<8x1xf32>
    %61 = vector.broadcast %60 : vector<8x1xf32> to vector<8x256xf32>
    %62 = arith.mulf %58, %61 : vector<8x256xf32>
    %c0_19 = arith.constant 0 : index
    %c111_20 = arith.constant 111 : index
    %63 = vector.load %arg7[%c0_19, %c111_20] : memref<8x401xf32, #tpu.memory_space<vmem>>, vector<8x256xf32>
    %cst_21 = arith.constant 0.000000e+00 : f32
    %64 = vector.shape_cast %22 : vector<1x256xi1> to vector<1x256xi1>
    %65 = vector.broadcast %64 : vector<1x256xi1> to vector<8x256xi1>
    %66 = vector.broadcast %cst_21 : f32 to vector<8x256xf32>
    %67 = arith.select %65, %63, %66 : vector<8x256xi1>, vector<8x256xf32>
    %68 = vector.extract_strided_slice %27 {offsets = [0, 0], sizes = [8, 1], strides = [1, 1]} : vector<8x9xf32> to vector<8x1xf32>
    %69 = vector.broadcast %68 : vector<8x1xf32> to vector<8x256xf32>
    %70 = arith.mulf %67, %69 : vector<8x256xf32>
    %71 = arith.addf %62, %70 : vector<8x256xf32>
    %c0_22 = arith.constant 0 : index
    %c112 = arith.constant 112 : index
    %72 = vector.load %arg7[%c0_22, %c112] : memref<8x401xf32, #tpu.memory_space<vmem>>, vector<8x256xf32>
    %73 = vector.extract_strided_slice %27 {offsets = [0, 1], sizes = [8, 1], strides = [1, 1]} : vector<8x9xf32> to vector<8x1xf32>
    %74 = vector.broadcast %73 : vector<8x1xf32> to vector<8x256xf32>
    %75 = arith.mulf %72, %74 : vector<8x256xf32>
    %76 = arith.addf %71, %75 : vector<8x256xf32>
    %c0_23 = arith.constant 0 : index
    %c113 = arith.constant 113 : index
    %77 = vector.load %arg7[%c0_23, %c113] : memref<8x401xf32, #tpu.memory_space<vmem>>, vector<8x256xf32>
    %cst_24 = arith.constant 0.000000e+00 : f32
    %78 = vector.shape_cast %24 : vector<1x256xi1> to vector<1x256xi1>
    %79 = vector.broadcast %78 : vector<1x256xi1> to vector<8x256xi1>
    %80 = vector.broadcast %cst_24 : f32 to vector<8x256xf32>
    %81 = arith.select %79, %77, %80 : vector<8x256xi1>, vector<8x256xf32>
    %82 = vector.extract_strided_slice %27 {offsets = [0, 2], sizes = [8, 1], strides = [1, 1]} : vector<8x9xf32> to vector<8x1xf32>
    %83 = vector.broadcast %82 : vector<8x1xf32> to vector<8x256xf32>
    %84 = arith.mulf %81, %83 : vector<8x256xf32>
    %85 = arith.addf %76, %84 : vector<8x256xf32>
    %c0_25 = arith.constant 0 : index
    %c127 = arith.constant 127 : index
    %86 = vector.load %arg7[%c0_25, %c127] : memref<8x401xf32, #tpu.memory_space<vmem>>, vector<8x256xf32>
    %cst_26 = arith.constant 0.000000e+00 : f32
    %87 = vector.shape_cast %22 : vector<1x256xi1> to vector<1x256xi1>
    %88 = vector.broadcast %87 : vector<1x256xi1> to vector<8x256xi1>
    %89 = vector.broadcast %cst_26 : f32 to vector<8x256xf32>
    %90 = arith.select %88, %86, %89 : vector<8x256xi1>, vector<8x256xf32>
    %91 = vector.extract_strided_slice %27 {offsets = [0, 3], sizes = [8, 1], strides = [1, 1]} : vector<8x9xf32> to vector<8x1xf32>
    %92 = vector.broadcast %91 : vector<8x1xf32> to vector<8x256xf32>
    %93 = arith.mulf %90, %92 : vector<8x256xf32>
    %94 = arith.addf %85, %93 : vector<8x256xf32>
    %c0_27 = arith.constant 0 : index
    %c129 = arith.constant 129 : index
    %95 = vector.load %arg7[%c0_27, %c129] : memref<8x401xf32, #tpu.memory_space<vmem>>, vector<8x256xf32>
    %cst_28 = arith.constant 0.000000e+00 : f32
    %96 = vector.shape_cast %24 : vector<1x256xi1> to vector<1x256xi1>
    %97 = vector.broadcast %96 : vector<1x256xi1> to vector<8x256xi1>
    %98 = vector.broadcast %cst_28 : f32 to vector<8x256xf32>
    %99 = arith.select %97, %95, %98 : vector<8x256xi1>, vector<8x256xf32>
    %100 = vector.extract_strided_slice %27 {offsets = [0, 5], sizes = [8, 1], strides = [1, 1]} : vector<8x9xf32> to vector<8x1xf32>
    %101 = vector.broadcast %100 : vector<8x1xf32> to vector<8x256xf32>
    %102 = arith.mulf %99, %101 : vector<8x256xf32>
    %103 = arith.addf %94, %102 : vector<8x256xf32>
    %c0_29 = arith.constant 0 : index
    %c143 = arith.constant 143 : index
    %104 = vector.load %arg7[%c0_29, %c143] : memref<8x401xf32, #tpu.memory_space<vmem>>, vector<8x256xf32>
    %cst_30 = arith.constant 0.000000e+00 : f32
    %105 = vector.shape_cast %22 : vector<1x256xi1> to vector<1x256xi1>
    %106 = vector.broadcast %105 : vector<1x256xi1> to vector<8x256xi1>
    %107 = vector.broadcast %cst_30 : f32 to vector<8x256xf32>
    %108 = arith.select %106, %104, %107 : vector<8x256xi1>, vector<8x256xf32>
    %109 = vector.extract_strided_slice %27 {offsets = [0, 6], sizes = [8, 1], strides = [1, 1]} : vector<8x9xf32> to vector<8x1xf32>
    %110 = vector.broadcast %109 : vector<8x1xf32> to vector<8x256xf32>
    %111 = arith.mulf %108, %110 : vector<8x256xf32>
    %112 = arith.addf %103, %111 : vector<8x256xf32>
    %c0_31 = arith.constant 0 : index
    %c144 = arith.constant 144 : index
    %113 = vector.load %arg7[%c0_31, %c144] : memref<8x401xf32, #tpu.memory_space<vmem>>, vector<8x256xf32>
    %114 = vector.extract_strided_slice %27 {offsets = [0, 7], sizes = [8, 1], strides = [1, 1]} : vector<8x9xf32> to vector<8x1xf32>
    %115 = vector.broadcast %114 : vector<8x1xf32> to vector<8x256xf32>
    %116 = arith.mulf %113, %115 : vector<8x256xf32>
    %117 = arith.addf %112, %116 : vector<8x256xf32>
    %c0_32 = arith.constant 0 : index
    %c145 = arith.constant 145 : index
    %118 = vector.load %arg7[%c0_32, %c145] : memref<8x401xf32, #tpu.memory_space<vmem>>, vector<8x256xf32>
    %cst_33 = arith.constant 0.000000e+00 : f32
    %119 = vector.shape_cast %24 : vector<1x256xi1> to vector<1x256xi1>
    %120 = vector.broadcast %119 : vector<1x256xi1> to vector<8x256xi1>
    %121 = vector.broadcast %cst_33 : f32 to vector<8x256xf32>
    %122 = arith.select %120, %118, %121 : vector<8x256xi1>, vector<8x256xf32>
    %123 = vector.extract_strided_slice %27 {offsets = [0, 8], sizes = [8, 1], strides = [1, 1]} : vector<8x9xf32> to vector<8x1xf32>
    %124 = vector.broadcast %123 : vector<8x1xf32> to vector<8x256xf32>
    %125 = arith.mulf %122, %124 : vector<8x256xf32>
    %126 = arith.addf %117, %125 : vector<8x256xf32>
    %127 = vector.broadcast %28 : vector<8x1xf32> to vector<8x256xf32>
    %128 = arith.addf %126, %127 : vector<8x256xf32>
    %cst_34 = arith.constant 0.00999999977 : f32
    %129 = vector.broadcast %cst_34 : f32 to vector<8x256xf32>
    %130 = arith.mulf %129, %128 : vector<8x256xf32>
    %131 = arith.maximumf %128, %130 : vector<8x256xf32>
    %c0_35 = arith.constant 0 : index
    %c0_36 = arith.constant 0 : index
    %c0_37 = arith.constant 0 : index
    %132 = vector.load %arg6[%c0_35, %c0_36, %c0_37] : memref<2x8x256xf32, #tpu.memory_space<vmem>>, vector<1x8x256xf32>
    %133 = vector.shape_cast %132 : vector<1x8x256xf32> to vector<8x256xf32>
    %134 = vector.shape_cast %131 : vector<8x256xf32> to vector<1x8x256xf32>
    tpu.vector_store %arg6[%c0_35, %c0_36, %c0_37], %134 {strides = array<i32>} : memref<2x8x256xf32, #tpu.memory_space<vmem>>, vector<1x8x256xf32>,
    %c1 = arith.constant 1 : index
    %c0_38 = arith.constant 0 : index
    %c0_39 = arith.constant 0 : index
    %135 = vector.load %arg1[%c1, %c0_38, %c0_39] : memref<2x4x256xf32, #tpu.memory_space<vmem>>, vector<1x4x256xf32>
    %136 = vector.shape_cast %135 : vector<1x4x256xf32> to vector<4x256xf32>
    %137 = vector.extract_strided_slice %25 {offsets = [0, 0], sizes = [8, 1], strides = [1, 1]} : vector<8x4xf32> to vector<8x1xf32>
    %138 = vector.extract_strided_slice %136 {offsets = [0, 0], sizes = [1, 256], strides = [1, 1]} : vector<4x256xf32> to vector<1x256xf32>
    %139 = vector.broadcast %137 : vector<8x1xf32> to vector<8x256xf32>
    %140 = vector.broadcast %138 : vector<1x256xf32> to vector<8x256xf32>
    %141 = arith.mulf %139, %140 : vector<8x256xf32>
    %142 = vector.extract_strided_slice %25 {offsets = [0, 1], sizes = [8, 1], strides = [1, 1]} : vector<8x4xf32> to vector<8x1xf32>
    %143 = vector.extract_strided_slice %136 {offsets = [1, 0], sizes = [1, 256], strides = [1, 1]} : vector<4x256xf32> to vector<1x256xf32>
    %144 = vector.broadcast %142 : vector<8x1xf32> to vector<8x256xf32>
    %145 = vector.broadcast %143 : vector<1x256xf32> to vector<8x256xf32>
    %146 = arith.mulf %144, %145 : vector<8x256xf32>
    %147 = arith.addf %141, %146 : vector<8x256xf32>
    %148 = vector.extract_strided_slice %25 {offsets = [0, 2], sizes = [8, 1], strides = [1, 1]} : vector<8x4xf32> to vector<8x1xf32>
    %149 = vector.extract_strided_slice %136 {offsets = [2, 0], sizes = [1, 256], strides = [1, 1]} : vector<4x256xf32> to vector<1x256xf32>
    %150 = vector.broadcast %148 : vector<8x1xf32> to vector<8x256xf32>
    %151 = vector.broadcast %149 : vector<1x256xf32> to vector<8x256xf32>
    %152 = arith.mulf %150, %151 : vector<8x256xf32>
    %153 = arith.addf %147, %152 : vector<8x256xf32>
    %154 = vector.extract_strided_slice %25 {offsets = [0, 3], sizes = [8, 1], strides = [1, 1]} : vector<8x4xf32> to vector<8x1xf32>
    %155 = vector.extract_strided_slice %136 {offsets = [3, 0], sizes = [1, 256], strides = [1, 1]} : vector<4x256xf32> to vector<1x256xf32>
    %156 = vector.broadcast %154 : vector<8x1xf32> to vector<8x256xf32>
    %157 = vector.broadcast %155 : vector<1x256xf32> to vector<8x256xf32>
    %158 = arith.mulf %156, %157 : vector<8x256xf32>
    %159 = arith.addf %153, %158 : vector<8x256xf32>
    %160 = vector.broadcast %26 : vector<8x1xf32> to vector<8x256xf32>
    %161 = arith.addf %159, %160 : vector<8x256xf32>
    %cst_40 = arith.constant 0.00999999977 : f32
    %162 = vector.broadcast %cst_40 : f32 to vector<8x256xf32>
    %163 = arith.mulf %162, %161 : vector<8x256xf32>
    %164 = arith.maximumf %161, %163 : vector<8x256xf32>
    %c0_41 = arith.constant 0 : index
    %c128_42 = arith.constant 128 : index
    %165 = vector.load %arg7[%c0_41, %c128_42] : memref<8x401xf32, #tpu.memory_space<vmem>>, vector<8x256xf32>
    tpu.vector_store %arg7[%c0_41, %c128_42], %164 {strides = array<i32>} : memref<8x401xf32, #tpu.memory_space<vmem>>, vector<8x256xf32>,
    %166 = vector.extract_strided_slice %27 {offsets = [0, 4], sizes = [8, 1], strides = [1, 1]} : vector<8x9xf32> to vector<8x1xf32>
    %167 = vector.broadcast %166 : vector<8x1xf32> to vector<8x256xf32>
    %168 = arith.mulf %164, %167 : vector<8x256xf32>
    %c0_43 = arith.constant 0 : index
    %c111_44 = arith.constant 111 : index
    %169 = vector.load %arg7[%c0_43, %c111_44] : memref<8x401xf32, #tpu.memory_space<vmem>>, vector<8x256xf32>
    %cst_45 = arith.constant 0.000000e+00 : f32
    %170 = vector.shape_cast %22 : vector<1x256xi1> to vector<1x256xi1>
    %171 = vector.broadcast %170 : vector<1x256xi1> to vector<8x256xi1>
    %172 = vector.broadcast %cst_45 : f32 to vector<8x256xf32>
    %173 = arith.select %171, %169, %172 : vector<8x256xi1>, vector<8x256xf32>
    %174 = vector.extract_strided_slice %27 {offsets = [0, 0], sizes = [8, 1], strides = [1, 1]} : vector<8x9xf32> to vector<8x1xf32>
    %175 = vector.broadcast %174 : vector<8x1xf32> to vector<8x256xf32>
    %176 = arith.mulf %173, %175 : vector<8x256xf32>
    %177 = arith.addf %168, %176 : vector<8x256xf32>
    %c0_46 = arith.constant 0 : index
    %c112_47 = arith.constant 112 : index
    %178 = vector.load %arg7[%c0_46, %c112_47] : memref<8x401xf32, #tpu.memory_space<vmem>>, vector<8x256xf32>
    %179 = vector.extract_strided_slice %27 {offsets = [0, 1], sizes = [8, 1], strides = [1, 1]} : vector<8x9xf32> to vector<8x1xf32>
    %180 = vector.broadcast %179 : vector<8x1xf32> to vector<8x256xf32>
    %181 = arith.mulf %178, %180 : vector<8x256xf32>
    %182 = arith.addf %177, %181 : vector<8x256xf32>
    %c0_48 = arith.constant 0 : index
    %c113_49 = arith.constant 113 : index
    %183 = vector.load %arg7[%c0_48, %c113_49] : memref<8x401xf32, #tpu.memory_space<vmem>>, vector<8x256xf32>
    %cst_50 = arith.constant 0.000000e+00 : f32
    %184 = vector.shape_cast %24 : vector<1x256xi1> to vector<1x256xi1>
    %185 = vector.broadcast %184 : vector<1x256xi1> to vector<8x256xi1>
    %186 = vector.broadcast %cst_50 : f32 to vector<8x256xf32>
    %187 = arith.select %185, %183, %186 : vector<8x256xi1>, vector<8x256xf32>
    %188 = vector.extract_strided_slice %27 {offsets = [0, 2], sizes = [8, 1], strides = [1, 1]} : vector<8x9xf32> to vector<8x1xf32>
    %189 = vector.broadcast %188 : vector<8x1xf32> to vector<8x256xf32>
    %190 = arith.mulf %187, %189 : vector<8x256xf32>
    %191 = arith.addf %182, %190 : vector<8x256xf32>
    %c0_51 = arith.constant 0 : index
    %c127_52 = arith.constant 127 : index
    %192 = vector.load %arg7[%c0_51, %c127_52] : memref<8x401xf32, #tpu.memory_space<vmem>>, vector<8x256xf32>
    %cst_53 = arith.constant 0.000000e+00 : f32
    %193 = vector.shape_cast %22 : vector<1x256xi1> to vector<1x256xi1>
    %194 = vector.broadcast %193 : vector<1x256xi1> to vector<8x256xi1>
    %195 = vector.broadcast %cst_53 : f32 to vector<8x256xf32>
    %196 = arith.select %194, %192, %195 : vector<8x256xi1>, vector<8x256xf32>
    %197 = vector.extract_strided_slice %27 {offsets = [0, 3], sizes = [8, 1], strides = [1, 1]} : vector<8x9xf32> to vector<8x1xf32>
    %198 = vector.broadcast %197 : vector<8x1xf32> to vector<8x256xf32>
    %199 = arith.mulf %196, %198 : vector<8x256xf32>
    %200 = arith.addf %191, %199 : vector<8x256xf32>
    %c0_54 = arith.constant 0 : index
    %c129_55 = arith.constant 129 : index
    %201 = vector.load %arg7[%c0_54, %c129_55] : memref<8x401xf32, #tpu.memory_space<vmem>>, vector<8x256xf32>
    %cst_56 = arith.constant 0.000000e+00 : f32
    %202 = vector.shape_cast %24 : vector<1x256xi1> to vector<1x256xi1>
    %203 = vector.broadcast %202 : vector<1x256xi1> to vector<8x256xi1>
    %204 = vector.broadcast %cst_56 : f32 to vector<8x256xf32>
    %205 = arith.select %203, %201, %204 : vector<8x256xi1>, vector<8x256xf32>
    %206 = vector.extract_strided_slice %27 {offsets = [0, 5], sizes = [8, 1], strides = [1, 1]} : vector<8x9xf32> to vector<8x1xf32>
    %207 = vector.broadcast %206 : vector<8x1xf32> to vector<8x256xf32>
    %208 = arith.mulf %205, %207 : vector<8x256xf32>
    %209 = arith.addf %200, %208 : vector<8x256xf32>
    %c0_57 = arith.constant 0 : index
    %c143_58 = arith.constant 143 : index
    %210 = vector.load %arg7[%c0_57, %c143_58] : memref<8x401xf32, #tpu.memory_space<vmem>>, vector<8x256xf32>
    %cst_59 = arith.constant 0.000000e+00 : f32
    %211 = vector.shape_cast %22 : vector<1x256xi1> to vector<1x256xi1>
    %212 = vector.broadcast %211 : vector<1x256xi1> to vector<8x256xi1>
    %213 = vector.broadcast %cst_59 : f32 to vector<8x256xf32>
    %214 = arith.select %212, %210, %213 : vector<8x256xi1>, vector<8x256xf32>
    %215 = vector.extract_strided_slice %27 {offsets = [0, 6], sizes = [8, 1], strides = [1, 1]} : vector<8x9xf32> to vector<8x1xf32>
    %216 = vector.broadcast %215 : vector<8x1xf32> to vector<8x256xf32>
    %217 = arith.mulf %214, %216 : vector<8x256xf32>
    %218 = arith.addf %209, %217 : vector<8x256xf32>
    %c0_60 = arith.constant 0 : index
    %c144_61 = arith.constant 144 : index
    %219 = vector.load %arg7[%c0_60, %c144_61] : memref<8x401xf32, #tpu.memory_space<vmem>>, vector<8x256xf32>
    %220 = vector.extract_strided_slice %27 {offsets = [0, 7], sizes = [8, 1], strides = [1, 1]} : vector<8x9xf32> to vector<8x1xf32>
    %221 = vector.broadcast %220 : vector<8x1xf32> to vector<8x256xf32>
    %222 = arith.mulf %219, %221 : vector<8x256xf32>
    %223 = arith.addf %218, %222 : vector<8x256xf32>
    %c0_62 = arith.constant 0 : index
    %c145_63 = arith.constant 145 : index
    %224 = vector.load %arg7[%c0_62, %c145_63] : memref<8x401xf32, #tpu.memory_space<vmem>>, vector<8x256xf32>
    %cst_64 = arith.constant 0.000000e+00 : f32
    %225 = vector.shape_cast %24 : vector<1x256xi1> to vector<1x256xi1>
    %226 = vector.broadcast %225 : vector<1x256xi1> to vector<8x256xi1>
    %227 = vector.broadcast %cst_64 : f32 to vector<8x256xf32>
    %228 = arith.select %226, %224, %227 : vector<8x256xi1>, vector<8x256xf32>
    %229 = vector.extract_strided_slice %27 {offsets = [0, 8], sizes = [8, 1], strides = [1, 1]} : vector<8x9xf32> to vector<8x1xf32>
    %230 = vector.broadcast %229 : vector<8x1xf32> to vector<8x256xf32>
    %231 = arith.mulf %228, %230 : vector<8x256xf32>
    %232 = arith.addf %223, %231 : vector<8x256xf32>
    %233 = vector.broadcast %28 : vector<8x1xf32> to vector<8x256xf32>
    %234 = arith.addf %232, %233 : vector<8x256xf32>
    %cst_65 = arith.constant 0.00999999977 : f32
    %235 = vector.broadcast %cst_65 : f32 to vector<8x256xf32>
    %236 = arith.mulf %235, %234 : vector<8x256xf32>
    %237 = arith.maximumf %234, %236 : vector<8x256xf32>
    %c1_66 = arith.constant 1 : index
    %c0_67 = arith.constant 0 : index
    %c0_68 = arith.constant 0 : index
    %238 = vector.load %arg6[%c1_66, %c0_67, %c0_68] : memref<2x8x256xf32, #tpu.memory_space<vmem>>, vector<1x8x256xf32>
    %239 = vector.shape_cast %238 : vector<1x8x256xf32> to vector<8x256xf32>
    %240 = vector.shape_cast %237 : vector<8x256xf32> to vector<1x8x256xf32>
    tpu.vector_store %arg6[%c1_66, %c0_67, %c0_68], %240 {strides = array<i32>} : memref<2x8x256xf32, #tpu.memory_space<vmem>>, vector<1x8x256xf32>,
    return
  }
  func.func @transform_0(%arg0: i32) -> (i32, i32, i32) {
    %c0_i32 = arith.constant 0 : i32
    %c0_i32_0 = arith.constant 0 : i32
    %c0_i32_1 = arith.constant 0 : i32
    return %arg0, %c0_i32, %c0_i32_0 : i32, i32, i32
  }
  func.func @transform_1(%arg0: i32) -> (i32, i32) {
    %c0_i32 = arith.constant 0 : i32
    %c0_i32_0 = arith.constant 0 : i32
    %c0_i32_1 = arith.constant 0 : i32
    return %c0_i32, %c0_i32_0 : i32, i32
  }
  func.func @transform_2(%arg0: i32) -> (i32, i32) {
    %c0_i32 = arith.constant 0 : i32
    %c0_i32_0 = arith.constant 0 : i32
    %c0_i32_1 = arith.constant 0 : i32
    return %c0_i32, %c0_i32_0 : i32, i32
  }
  func.func @transform_3(%arg0: i32) -> (i32, i32) {
    %c0_i32 = arith.constant 0 : i32
    %c0_i32_0 = arith.constant 0 : i32
    %c0_i32_1 = arith.constant 0 : i32
    return %c0_i32, %c0_i32_0 : i32, i32
  }
  func.func @transform_4(%arg0: i32) -> (i32, i32) {
    %c0_i32 = arith.constant 0 : i32
    %c0_i32_0 = arith.constant 0 : i32
    %c0_i32_1 = arith.constant 0 : i32
    return %c0_i32, %c0_i32_0 : i32, i32
  }
  func.func @transform_5(%arg0: i32) -> (i32, i32, i32) {
    %c0_i32 = arith.constant 0 : i32
    %c0_i32_0 = arith.constant 0 : i32
    %c0_i32_1 = arith.constant 0 : i32
    return %arg0, %c0_i32, %c0_i32_0 : i32, i32, i32
  }
}

</mosaic_0001>

<llo_original>
// kernel: cnnconv_forward.1
$region0: #{cnnconv_forward.1}
  #allocation0 [shape = 'u32[]', space=smem, size = 0x4, offset = 0x4, fixed_abs, tag = 'smem constant byte address 0x4 - core index']
  #allocation1 [shape = 'u32[144,128]{1,0:T(1,128)}', space=vmem, size = 0x12000, scoped, tag = 'internal scratch']
  #allocation2 [shape = 'f32[8,401]{1,0:T(8,128)}', space=vmem, size = 0x4000, scoped, tag = 'scratch operand']
  %s0 = inlined_call_operand.vmem [shape: f32[2,4,256], index: 0, kind: input, shape index: {}]
  %s1 = inlined_call_operand.vmem [shape: f32[8,4], index: 1, kind: input, shape index: {}]
  %s2 = inlined_call_operand.vmem [shape: f32[8,1], index: 2, kind: input, shape index: {}]
  %s3 = inlined_call_operand.vmem [shape: f32[8,9], index: 3, kind: input, shape index: {}]
  %s4 = inlined_call_operand.vmem [shape: f32[8,1], index: 4, kind: input, shape index: {}]
  %s5 = inlined_call_operand.vmem [shape: f32[2,8,256], index: 5, kind: output, shape index: {}]
  %s6 = sld [smem:[#allocation0]]
  $region30: #{cnnconv_forward.1} parent=0
    _
  %s8 = ssub.s32 1, %s6
  %s9 = scalar_select 0, %s8, %s6
  // Predicated region
  $region2: #{cnnconv_forward.1} parent=0 // pred_check
    _
  $region3: #{cnnconv_forward.1} parent=0 // pred_check_branch
    %11 = sbr.rel (0) target = $region5
  $region4: #{cnnconv_forward.1} parent=0 // pred_region
    _
  $region5: #{cnnconv_forward.1} parent=0 // pred_fallthru
    _
  // Predicated region
  $region6: #{cnnconv_forward.1} parent=0 // pred_check
    _
  $region7: #{cnnconv_forward.1} parent=0 // pred_check_branch
    %13 = sbr.rel (0) target = $region9
  $region8: #{cnnconv_forward.1} parent=0 // pred_region
    _
  $region9: #{cnnconv_forward.1} parent=0 // pred_fallthru
    _
  // Predicated region
  $region10: #{cnnconv_forward.1} parent=0 // pred_check
    _
  $region11: #{cnnconv_forward.1} parent=0 // pred_check_branch
    %15 = sbr.rel (0) target = $region13
  $region12: #{cnnconv_forward.1} parent=0 // pred_region
    _
  $region13: #{cnnconv_forward.1} parent=0 // pred_fallthru
    _
  // Predicated region
  $region14: #{cnnconv_forward.1} parent=0 // pred_check
    _
  $region15: #{cnnconv_forward.1} parent=0 // pred_check_branch
    %17 = sbr.rel (0) target = $region17
  $region16: #{cnnconv_forward.1} parent=0 // pred_region
    _
  $region17: #{cnnconv_forward.1} parent=0 // pred_fallthru
    _
  // Predicated region
  $region18: #{cnnconv_forward.1} parent=0 // pred_check
    _
  $region19: #{cnnconv_forward.1} parent=0 // pred_check_branch
    %19 = sbr.rel (0) target = $region21
  $region20: #{cnnconv_forward.1} parent=0 // pred_region
    _
  $region21: #{cnnconv_forward.1} parent=0 // pred_fallthru
    _
  %vm20 = vcmask 1048440
  %21 = vst.msk [vmem:[#allocation2] sm:$0xff] %vm20, 0.0
  %vm22 = vcmask 138240
  %23 = vst.msk [vmem:[#allocation2 + $0x18] sm:$0xff] %vm22, 0.0
  %v24 = vlaneseq
  %v25 = vand.u32 %v24, 127
  %v26 = vadd.s32 %v25, 128
  %vm27 = vcmp.lt.s32.totalorder %v25, 0
  %v28 = vsub.s32 0, %v25
  %v29 = vsel %vm27, %v28, %v25
  %v30 = vshrl.u32 %v29, 4
  %v31 = vand.u32 %v29, 15
  %v32 = vsub.s32 0, %v31
  %v33 = vsel %vm27, %v32, %v31
  %vm34 = vcmp.lt.s32.totalorder %v26, 0
  %v35 = vsub.s32 0, %v26
  %v36 = vsel %vm34, %v35, %v26
  %v37 = vshrl.u32 %v36, 4
  %v38 = vand.u32 %v36, 15
  %v39 = vsub.s32 0, %v38
  %v40 = vsel %vm34, %v39, %v38
  %vm41 = vcmp.ne.s32.totalorder %v33, 0
  %vm42 = vcmp.ne.s32.totalorder %v40, 0
  %vm43 = vcmp.lt.s32.totalorder %v33, 0
  %vm44 = vcmp.lt.s32.totalorder %v40, 0
  %vm45 = vmand %vm43, %vm41
  %vm46 = vmand %vm44, %vm42
  %v47 = vadd.s32 %v33, 16
  %v48 = vadd.s32 %v40, 16
  %v49 = vsel %vm45, %v47, %v33
  %v50 = vsel %vm46, %v48, %v40
  %vm51 = vcmp.ge.s32.totalorder %v49, 1
  %vm52 = vcmp.ge.s32.totalorder %v50, 1
  %vm53 = vcmp.le.s32.totalorder %v49, 14
  %vm54 = vcmp.le.s32.totalorder %v50, 14
  %v55 = vld [vmem:[%s1] sm:$0xff]
  %v56 = vld [vmem:[%s2] sm:$0xff]
  %v57 = vld [vmem:[%s3] sm:$0xff]
  %v58 = vld [vmem:[%s4] sm:$0xff]
  %v59 = vld [vmem:[%s0] sm:$0xff]
  %61 = vset.pattern.permute.xlu0 0
  %62 = vperm.xlu0 %61, %v55
  %v63 = vpop.permute.xlu0 %62
  %v66 = vlaneseq
  %v67 = vshrl.u32 %v66, 7
  %v68 = vsub.s32 0, %v67
  %v69 = vrot.slane %v59, %v68
  %v70 = vlaneseq
  %v71 = vshrl.u32 %v70, 7
  %v72 = vsub.s32 4, %v71
  %v73 = vrot.slane %v59, %v72
  %v76 = vlaneseq
  %v77 = vshrl.u32 %v76, 7
  %v78 = vsub.s32 0, %v77
  %v79 = vrot.slane %v69, %v78
  %v80 = vlaneseq
  %v81 = vshrl.u32 %v80, 7
  %v82 = vsub.s32 0, %v81
  %v83 = vrot.slane %v73, %v82
  %v84 = vmul.f32 %v63, %v79
  %v85 = vmul.f32 %v63, %v83
  %86 = vset.pattern.permute.xlu0 1
  %87 = vperm.xlu0 %86, %v55
  %v88 = vpop.permute.xlu0 %87
  %v90 = vlaneseq
  %v91 = vshrl.u32 %v90, 7
  %v92 = vsub.s32 1, %v91
  %v93 = vrot.slane %v59, %v92
  %v94 = vlaneseq
  %v95 = vshrl.u32 %v94, 7
  %v96 = vsub.s32 5, %v95
  %v97 = vrot.slane %v59, %v96
  %v100 = vlaneseq
  %v101 = vshrl.u32 %v100, 7
  %v102 = vsub.s32 1, %v101
  %v103 = vrot.slane %v93, %v102
  %v104 = vlaneseq
  %v105 = vshrl.u32 %v104, 7
  %v106 = vsub.s32 1, %v105
  %v107 = vrot.slane %v97, %v106
  %v108 = vmul.f32 %v88, %v103
  %v109 = vmul.f32 %v88, %v107
  %v110 = vadd.f32 %v84, %v108
  %v111 = vadd.f32 %v85, %v109
  %112 = vset.pattern.permute.xlu0 2
  %113 = vperm.xlu0 %112, %v55
  %v114 = vpop.permute.xlu0 %113
  %v116 = vlaneseq
  %v117 = vshrl.u32 %v116, 7
  %v118 = vsub.s32 2, %v117
  %v119 = vrot.slane %v59, %v118
  %v120 = vlaneseq
  %v121 = vshrl.u32 %v120, 7
  %v122 = vsub.s32 6, %v121
  %v123 = vrot.slane %v59, %v122
  %v126 = vlaneseq
  %v127 = vshrl.u32 %v126, 7
  %v128 = vsub.s32 2, %v127
  %v129 = vrot.slane %v119, %v128
  %v130 = vlaneseq
  %v131 = vshrl.u32 %v130, 7
  %v132 = vsub.s32 2, %v131
  %v133 = vrot.slane %v123, %v132
  %v134 = vmul.f32 %v114, %v129
  %v135 = vmul.f32 %v114, %v133
  %v136 = vadd.f32 %v110, %v134
  %v137 = vadd.f32 %v111, %v135
  %138 = vset.pattern.permute.xlu0 3
  %139 = vperm.xlu0 %138, %v55
  %v140 = vpop.permute.xlu0 %139
  %v142 = vlaneseq
  %v143 = vshrl.u32 %v142, 7
  %v144 = vsub.s32 3, %v143
  %v145 = vrot.slane %v59, %v144
  %v146 = vlaneseq
  %v147 = vshrl.u32 %v146, 7
  %v148 = vsub.s32 7, %v147
  %v149 = vrot.slane %v59, %v148
  %v152 = vlaneseq
  %v153 = vshrl.u32 %v152, 7
  %v154 = vsub.s32 3, %v153
  %v155 = vrot.slane %v145, %v154
  %v156 = vlaneseq
  %v157 = vshrl.u32 %v156, 7
  %v158 = vsub.s32 3, %v157
  %v159 = vrot.slane %v149, %v158
  %v160 = vmul.f32 %v140, %v155
  %v161 = vmul.f32 %v140, %v159
  %v162 = vadd.f32 %v136, %v160
  %v163 = vadd.f32 %v137, %v161
  %165 = vset.pattern.permute.xlu0 0
  %166 = vperm.xlu0 %165, %v56
  %v167 = vpop.permute.xlu0 %166
  %v169 = vadd.f32 %v162, %v167
  %v170 = vadd.f32 %v163, %v167
  %v171 = vmul.f32 %v169, 0.01
  %v172 = vmul.f32 %v170, 0.01
  %v173 = vmax.f32 %v169, %v171
  %v174 = vmax.f32 %v170, %v172
  %175 = vst [vmem:[#allocation2 + $0x8] sm:$0xff] %v173
  %176 = vst [vmem:[#allocation2 + $0x10] sm:$0xff] %v174
  %178 = vset.pattern.permute.xlu0 4
  %179 = vperm.xlu0 %178, %v57
  %v180 = vpop.permute.xlu0 %179
  %v182 = vmul.f32 %v173, %v180
  %v183 = vmul.f32 %v174, %v180
  %v184 = vld [vmem:[#allocation2] sm:$0xff]
  %v185 = vld [vmem:[#allocation2 + $0x8] sm:$0xff]
  %v186 = vld [vmem:[#allocation2 + $0x10] sm:$0xff]
  %v187 = vsel %vm51, 1, 0
  %v188 = vsel %vm52, 1, 0
  %vm189 = vcmp.eq.s32.totalorder %v187, 1
  %vm190 = vcmp.eq.s32.totalorder %v188, 1
  %194 = vrot.lane.b32.xlu0 %v184, 17
  %v195 = vpop.permute.xlu0 %194
  %196 = vrot.lane.b32.xlu0 %v185, 17
  %v197 = vpop.permute.xlu0 %196
  %198 = vrot.lane.b32.xlu0 %v186, 17
  %v199 = vpop.permute.xlu0 %198
  %v200 = vsel %vm22, %v195, %v197
  %v201 = vsel %vm22, %v197, %v199
  %v204 = vsel %vm189, %v200, 0.0
  %v205 = vsel %vm190, %v201, 0.0
  %206 = vset.pattern.permute.xlu0 0
  %207 = vperm.xlu0 %206, %v57
  %v208 = vpop.permute.xlu0 %207
  %v210 = vmul.f32 %v204, %v208
  %v211 = vmul.f32 %v205, %v208
  %v212 = vadd.f32 %v182, %v210
  %v213 = vadd.f32 %v183, %v211
  %214 = vset.pattern.permute.xlu0 1
  %215 = vperm.xlu0 %214, %v57
  %v216 = vpop.permute.xlu0 %215
  %v218 = vmul.f32 %v184, %v216
  %v219 = vmul.f32 %v185, %v216
  %v220 = vmul.f32 %v186, %v216
  %224 = vrot.lane.b32.xlu0 %v218, 16
  %v225 = vpop.permute.xlu0 %224
  %226 = vrot.lane.b32.xlu0 %v219, 16
  %v227 = vpop.permute.xlu0 %226
  %228 = vrot.lane.b32.xlu0 %v220, 16
  %v229 = vpop.permute.xlu0 %228
  %vm230 = vcmask 130048
  %v231 = vsel %vm230, %v225, %v227
  %v232 = vsel %vm230, %v227, %v229
  %v235 = vadd.f32 %v212, %v231
  %v236 = vadd.f32 %v213, %v232
  %v237 = vsel %vm53, 1, 0
  %v238 = vsel %vm54, 1, 0
  %vm239 = vcmp.eq.s32.totalorder %v237, 1
  %vm240 = vcmp.eq.s32.totalorder %v238, 1
  %241 = vrot.lane.b32.xlu0 %v184, 15
  %v242 = vpop.permute.xlu0 %241
  %243 = vrot.lane.b32.xlu0 %v185, 15
  %v244 = vpop.permute.xlu0 %243
  %245 = vrot.lane.b32.xlu0 %v186, 15
  %v246 = vpop.permute.xlu0 %245
  %vm247 = vcmask 121856
  %v248 = vsel %vm247, %v242, %v244
  %v249 = vsel %vm247, %v244, %v246
  %v252 = vsel %vm239, %v248, 0.0
  %v253 = vsel %vm240, %v249, 0.0
  %254 = vset.pattern.permute.xlu0 2
  %255 = vperm.xlu0 %254, %v57
  %v256 = vpop.permute.xlu0 %255
  %v258 = vmul.f32 %v252, %v256
  %v259 = vmul.f32 %v253, %v256
  %v260 = vadd.f32 %v235, %v258
  %v261 = vadd.f32 %v236, %v259
  %262 = vrot.lane.b32.xlu0 %v184, 1
  %v263 = vpop.permute.xlu0 %262
  %264 = vrot.lane.b32.xlu0 %v185, 1
  %v265 = vpop.permute.xlu0 %264
  %266 = vrot.lane.b32.xlu0 %v186, 1
  %v267 = vpop.permute.xlu0 %266
  %vm268 = vcmask 7168
  %v269 = vsel %vm268, %v263, %v265
  %v270 = vsel %vm268, %v265, %v267
  %v273 = vsel %vm189, %v269, 0.0
  %v274 = vsel %vm190, %v270, 0.0
  %275 = vset.pattern.permute.xlu0 3
  %276 = vperm.xlu0 %275, %v57
  %v277 = vpop.permute.xlu0 %276
  %v279 = vmul.f32 %v273, %v277
  %v280 = vmul.f32 %v274, %v277
  %v281 = vadd.f32 %v260, %v279
  %v282 = vadd.f32 %v261, %v280
  %v283 = vld [vmem:[#allocation2 + $0x8] sm:$0xff]
  %v284 = vld [vmem:[#allocation2 + $0x10] sm:$0xff]
  %v285 = vld [vmem:[#allocation2 + $0x18] sm:$0xff]
  %289 = vrot.lane.b32.xlu0 %v283, 127
  %v290 = vpop.permute.xlu0 %289
  %291 = vrot.lane.b32.xlu0 %v284, 127
  %v292 = vpop.permute.xlu0 %291
  %293 = vrot.lane.b32.xlu0 %v285, 127
  %v294 = vpop.permute.xlu0 %293
  %vm295 = vcmask 1039360
  %v296 = vsel %vm295, %v290, %v292
  %v297 = vsel %vm295, %v292, %v294
  %v300 = vsel %vm239, %v296, 0.0
  %v301 = vsel %vm240, %v297, 0.0
  %302 = vset.pattern.permute.xlu0 5
  %303 = vperm.xlu0 %302, %v57
  %v304 = vpop.permute.xlu0 %303
  %v306 = vmul.f32 %v300, %v304
  %v307 = vmul.f32 %v301, %v304
  %v308 = vadd.f32 %v281, %v306
  %v309 = vadd.f32 %v282, %v307
  %310 = vrot.lane.b32.xlu0 %v283, 113
  %v311 = vpop.permute.xlu0 %310
  %312 = vrot.lane.b32.xlu0 %v284, 113
  %v313 = vpop.permute.xlu0 %312
  %314 = vrot.lane.b32.xlu0 %v285, 113
  %v315 = vpop.permute.xlu0 %314
  %vm316 = vcmask 924672
  %v317 = vsel %vm316, %v311, %v313
  %v318 = vsel %vm316, %v313, %v315
  %v321 = vsel %vm189, %v317, 0.0
  %v322 = vsel %vm190, %v318, 0.0
  %323 = vset.pattern.permute.xlu0 6
  %324 = vperm.xlu0 %323, %v57
  %v325 = vpop.permute.xlu0 %324
  %v327 = vmul.f32 %v321, %v325
  %v328 = vmul.f32 %v322, %v325
  %v329 = vadd.f32 %v308, %v327
  %v330 = vadd.f32 %v309, %v328
  %331 = vset.pattern.permute.xlu0 7
  %332 = vperm.xlu0 %331, %v57
  %v333 = vpop.permute.xlu0 %332
  %v335 = vmul.f32 %v283, %v333
  %v336 = vmul.f32 %v284, %v333
  %v337 = vmul.f32 %v285, %v333
  %341 = vrot.lane.b32.xlu0 %v335, 112
  %v342 = vpop.permute.xlu0 %341
  %343 = vrot.lane.b32.xlu0 %v336, 112
  %v344 = vpop.permute.xlu0 %343
  %345 = vrot.lane.b32.xlu0 %v337, 112
  %v346 = vpop.permute.xlu0 %345
  %vm347 = vcmask 916480
  %v348 = vsel %vm347, %v342, %v344
  %v349 = vsel %vm347, %v344, %v346
  %v352 = vadd.f32 %v329, %v348
  %v353 = vadd.f32 %v330, %v349
  %354 = vrot.lane.b32.xlu0 %v283, 111
  %v355 = vpop.permute.xlu0 %354
  %356 = vrot.lane.b32.xlu0 %v284, 111
  %v357 = vpop.permute.xlu0 %356
  %358 = vrot.lane.b32.xlu0 %v285, 111
  %v359 = vpop.permute.xlu0 %358
  %vm360 = vcmask 908288
  %v361 = vsel %vm360, %v355, %v357
  %v362 = vsel %vm360, %v357, %v359
  %v365 = vsel %vm239, %v361, 0.0
  %v366 = vsel %vm240, %v362, 0.0
  %367 = vset.pattern.permute.xlu0 8
  %368 = vperm.xlu0 %367, %v57
  %v369 = vpop.permute.xlu0 %368
  %v371 = vmul.f32 %v365, %v369
  %v372 = vmul.f32 %v366, %v369
  %v373 = vadd.f32 %v352, %v371
  %v374 = vadd.f32 %v353, %v372
  %376 = vset.pattern.permute.xlu0 0
  %377 = vperm.xlu0 %376, %v58
  %v378 = vpop.permute.xlu0 %377
  %v380 = vadd.f32 %v373, %v378
  %v381 = vadd.f32 %v374, %v378
  %v382 = vmul.f32 %v380, 0.01
  %v383 = vmul.f32 %v381, 0.01
  %v384 = vmax.f32 %v380, %v382
  %v385 = vmax.f32 %v381, %v383
  %386 = vst [vmem:[%s5] sm:$0xff] %v384
  %387 = vst [vmem:[%s5 + $0x8] sm:$0xff] %v385
  %s388 = scalar_lea.vmem %s0, 8
  %v389 = vld [vmem:[%s388] sm:$0xff]
  %v391 = vlaneseq
  %v392 = vshrl.u32 %v391, 7
  %v393 = vsub.s32 0, %v392
  %v394 = vrot.slane %v389, %v393
  %v395 = vlaneseq
  %v396 = vshrl.u32 %v395, 7
  %v397 = vsub.s32 4, %v396
  %v398 = vrot.slane %v389, %v397
  %v401 = vlaneseq
  %v402 = vshrl.u32 %v401, 7
  %v403 = vsub.s32 0, %v402
  %v404 = vrot.slane %v394, %v403
  %v405 = vlaneseq
  %v406 = vshrl.u32 %v405, 7
  %v407 = vsub.s32 0, %v406
  %v408 = vrot.slane %v398, %v407
  %v409 = vmul.f32 %v63, %v404
  %v410 = vmul.f32 %v63, %v408
  %v411 = vlaneseq
  %v412 = vshrl.u32 %v411, 7
  %v413 = vsub.s32 1, %v412
  %v414 = vrot.slane %v389, %v413
  %v415 = vlaneseq
  %v416 = vshrl.u32 %v415, 7
  %v417 = vsub.s32 5, %v416
  %v418 = vrot.slane %v389, %v417
  %v421 = vlaneseq
  %v422 = vshrl.u32 %v421, 7
  %v423 = vsub.s32 1, %v422
  %v424 = vrot.slane %v414, %v423
  %v425 = vlaneseq
  %v426 = vshrl.u32 %v425, 7
  %v427 = vsub.s32 1, %v426
  %v428 = vrot.slane %v418, %v427
  %v429 = vmul.f32 %v88, %v424
  %v430 = vmul.f32 %v88, %v428
  %v431 = vadd.f32 %v409, %v429
  %v432 = vadd.f32 %v410, %v430
  %v433 = vlaneseq
  %v434 = vshrl.u32 %v433, 7
  %v435 = vsub.s32 2, %v434
  %v436 = vrot.slane %v389, %v435
  %v437 = vlaneseq
  %v438 = vshrl.u32 %v437, 7
  %v439 = vsub.s32 6, %v438
  %v440 = vrot.slane %v389, %v439
  %v443 = vlaneseq
  %v444 = vshrl.u32 %v443, 7
  %v445 = vsub.s32 2, %v444
  %v446 = vrot.slane %v436, %v445
  %v447 = vlaneseq
  %v448 = vshrl.u32 %v447, 7
  %v449 = vsub.s32 2, %v448
  %v450 = vrot.slane %v440, %v449
  %v451 = vmul.f32 %v114, %v446
  %v452 = vmul.f32 %v114, %v450
  %v453 = vadd.f32 %v431, %v451
  %v454 = vadd.f32 %v432, %v452
  %v455 = vlaneseq
  %v456 = vshrl.u32 %v455, 7
  %v457 = vsub.s32 3, %v456
  %v458 = vrot.slane %v389, %v457
  %v459 = vlaneseq
  %v460 = vshrl.u32 %v459, 7
  %v461 = vsub.s32 7, %v460
  %v462 = vrot.slane %v389, %v461
  %v465 = vlaneseq
  %v466 = vshrl.u32 %v465, 7
  %v467 = vsub.s32 3, %v466
  %v468 = vrot.slane %v458, %v467
  %v469 = vlaneseq
  %v470 = vshrl.u32 %v469, 7
  %v471 = vsub.s32 3, %v470
  %v472 = vrot.slane %v462, %v471
  %v473 = vmul.f32 %v140, %v468
  %v474 = vmul.f32 %v140, %v472
  %v475 = vadd.f32 %v453, %v473
  %v476 = vadd.f32 %v454, %v474
  %v477 = vadd.f32 %v475, %v167
  %v478 = vadd.f32 %v476, %v167
  %v479 = vmul.f32 %v477, 0.01
  %v480 = vmul.f32 %v478, 0.01
  %v481 = vmax.f32 %v477, %v479
  %v482 = vmax.f32 %v478, %v480
  %483 = vst [vmem:[#allocation2 + $0x8] sm:$0xff] %v481
  %484 = vst [vmem:[#allocation2 + $0x10] sm:$0xff] %v482
  %v485 = vmul.f32 %v481, %v180
  %v486 = vmul.f32 %v482, %v180
  %v487 = vld [vmem:[#allocation2] sm:$0xff]
  %v488 = vld [vmem:[#allocation2 + $0x8] sm:$0xff]
  %v489 = vld [vmem:[#allocation2 + $0x10] sm:$0xff]
  %493 = vrot.lane.b32.xlu0 %v487, 17
  %v494 = vpop.permute.xlu0 %493
  %495 = vrot.lane.b32.xlu0 %v488, 17
  %v496 = vpop.permute.xlu0 %495
  %497 = vrot.lane.b32.xlu0 %v489, 17
  %v498 = vpop.permute.xlu0 %497
  %v499 = vsel %vm22, %v494, %v496
  %v500 = vsel %vm22, %v496, %v498
  %v503 = vsel %vm189, %v499, 0.0
  %v504 = vsel %vm190, %v500, 0.0
  %v505 = vmul.f32 %v503, %v208
  %v506 = vmul.f32 %v504, %v208
  %v507 = vadd.f32 %v485, %v505
  %v508 = vadd.f32 %v486, %v506
  %v509 = vmul.f32 %v487, %v216
  %v510 = vmul.f32 %v488, %v216
  %v511 = vmul.f32 %v489, %v216
  %515 = vrot.lane.b32.xlu0 %v509, 16
  %v516 = vpop.permute.xlu0 %515
  %517 = vrot.lane.b32.xlu0 %v510, 16
  %v518 = vpop.permute.xlu0 %517
  %519 = vrot.lane.b32.xlu0 %v511, 16
  %v520 = vpop.permute.xlu0 %519
  %v521 = vsel %vm230, %v516, %v518
  %v522 = vsel %vm230, %v518, %v520
  %v525 = vadd.f32 %v507, %v521
  %v526 = vadd.f32 %v508, %v522
  %527 = vrot.lane.b32.xlu0 %v487, 15
  %v528 = vpop.permute.xlu0 %527
  %529 = vrot.lane.b32.xlu0 %v488, 15
  %v530 = vpop.permute.xlu0 %529
  %531 = vrot.lane.b32.xlu0 %v489, 15
  %v532 = vpop.permute.xlu0 %531
  %v533 = vsel %vm247, %v528, %v530
  %v534 = vsel %vm247, %v530, %v532
  %v537 = vsel %vm239, %v533, 0.0
  %v538 = vsel %vm240, %v534, 0.0
  %v539 = vmul.f32 %v537, %v256
  %v540 = vmul.f32 %v538, %v256
  %v541 = vadd.f32 %v525, %v539
  %v542 = vadd.f32 %v526, %v540
  %543 = vrot.lane.b32.xlu0 %v487, 1
  %v544 = vpop.permute.xlu0 %543
  %545 = vrot.lane.b32.xlu0 %v488, 1
  %v546 = vpop.permute.xlu0 %545
  %547 = vrot.lane.b32.xlu0 %v489, 1
  %v548 = vpop.permute.xlu0 %547
  %v549 = vsel %vm268, %v544, %v546
  %v550 = vsel %vm268, %v546, %v548
  %v553 = vsel %vm189, %v549, 0.0
  %v554 = vsel %vm190, %v550, 0.0
  %v555 = vmul.f32 %v553, %v277
  %v556 = vmul.f32 %v554, %v277
  %v557 = vadd.f32 %v541, %v555
  %v558 = vadd.f32 %v542, %v556
  %v559 = vld [vmem:[#allocation2 + $0x18] sm:$0xff]
  %561 = vrot.lane.b32.xlu0 %v488, 127
  %v562 = vpop.permute.xlu0 %561
  %563 = vrot.lane.b32.xlu0 %v489, 127
  %v564 = vpop.permute.xlu0 %563
  %565 = vrot.lane.b32.xlu0 %v559, 127
  %v566 = vpop.permute.xlu0 %565
  %v567 = vsel %vm295, %v562, %v564
  %v568 = vsel %vm295, %v564, %v566
  %v571 = vsel %vm239, %v567, 0.0
  %v572 = vsel %vm240, %v568, 0.0
  %v573 = vmul.f32 %v571, %v304
  %v574 = vmul.f32 %v572, %v304
  %v575 = vadd.f32 %v557, %v573
  %v576 = vadd.f32 %v558, %v574
  %577 = vrot.lane.b32.xlu0 %v488, 113
  %v578 = vpop.permute.xlu0 %577
  %579 = vrot.lane.b32.xlu0 %v489, 113
  %v580 = vpop.permute.xlu0 %579
  %581 = vrot.lane.b32.xlu0 %v559, 113
  %v582 = vpop.permute.xlu0 %581
  %v583 = vsel %vm316, %v578, %v580
  %v584 = vsel %vm316, %v580, %v582
  %v587 = vsel %vm189, %v583, 0.0
  %v588 = vsel %vm190, %v584, 0.0
  %v589 = vmul.f32 %v587, %v325
  %v590 = vmul.f32 %v588, %v325
  %v591 = vadd.f32 %v575, %v589
  %v592 = vadd.f32 %v576, %v590
  %v593 = vmul.f32 %v488, %v333
  %v594 = vmul.f32 %v489, %v333
  %v595 = vmul.f32 %v559, %v333
  %599 = vrot.lane.b32.xlu0 %v593, 112
  %v600 = vpop.permute.xlu0 %599
  %601 = vrot.lane.b32.xlu0 %v594, 112
  %v602 = vpop.permute.xlu0 %601
  %603 = vrot.lane.b32.xlu0 %v595, 112
  %v604 = vpop.permute.xlu0 %603
  %v605 = vsel %vm347, %v600, %v602
  %v606 = vsel %vm347, %v602, %v604
  %v609 = vadd.f32 %v591, %v605
  %v610 = vadd.f32 %v592, %v606
  %611 = vrot.lane.b32.xlu0 %v488, 111
  %v612 = vpop.permute.xlu0 %611
  %613 = vrot.lane.b32.xlu0 %v489, 111
  %v614 = vpop.permute.xlu0 %613
  %615 = vrot.lane.b32.xlu0 %v559, 111
  %v616 = vpop.permute.xlu0 %615
  %v617 = vsel %vm360, %v612, %v614
  %v618 = vsel %vm360, %v614, %v616
  %v621 = vsel %vm239, %v617, 0.0
  %v622 = vsel %vm240, %v618, 0.0
  %v623 = vmul.f32 %v621, %v369
  %v624 = vmul.f32 %v622, %v369
  %v625 = vadd.f32 %v609, %v623
  %v626 = vadd.f32 %v610, %v624
  %v627 = vadd.f32 %v625, %v378
  %v628 = vadd.f32 %v626, %v378
  %v629 = vmul.f32 %v627, 0.01
  %v630 = vmul.f32 %v628, 0.01
  %v631 = vmax.f32 %v627, %v629
  %v632 = vmax.f32 %v628, %v630
  %s633 = scalar_lea.vmem %s5, 16
  %634 = vst [vmem:[%s633] sm:$0xff] %v631
  %635 = vst [vmem:[%s633 + $0x8] sm:$0xff] %v632
  // Predicated region
  $region22: #{cnnconv_forward.1} parent=0 // pred_check
    _
  $region23: #{cnnconv_forward.1} parent=0 // pred_check_branch
    %637 = sbr.rel (0) target = $region25
  $region24: #{cnnconv_forward.1} parent=0 // pred_region
    _
  $region25: #{cnnconv_forward.1} parent=0 // pred_fallthru
    _
  // Predicated region
  $region26: #{cnnconv_forward.1} parent=0 // pred_check
    _
  $region27: #{cnnconv_forward.1} parent=0 // pred_check_branch
    %639 = sbr.rel (0) target = $region29
  $region28: #{cnnconv_forward.1} parent=0 // pred_region
    _
  $region29: #{cnnconv_forward.1} parent=0 // pred_fallthru
    _

</llo_original>
